<compile_context>
chip_gen: v5e
topology: v5e:2x2
jax: 0.10.0
libtpu: 0.0.40
codegen_flags: <defaults>
</compile_context>

<pallas_src>
import functools

import jax
import jax.numpy as jnp
from jax import lax
from jax.experimental import pallas as pl
from jax.experimental.pallas import tpu as pltpu

LRELU_SLOPE = 0.2
IN_EPS = 1e-5                       # PyTorch InstanceNorm2d default (affine=False)
VMEM_LIMIT_BYTES = 32 * 1024 * 1024  # explicit scoped-VMEM limit (safe on v5e/v6e/v7x)


def _round_up(x, m):
    return ((x + m - 1) // m) * m


# ---------------------------------------------------------------------------
# Pallas kernels
# ---------------------------------------------------------------------------
def _conv_bias_act_kernel(p_ref, w_ref, b_ref, o_ref, *, apply_lrelu):
    """(TM, K) @ (K, TC) on the MXU (bf16 in, f32 accumulate) + bias [+ LReLU].

    Bias is added exactly once per output tile (K is kept whole per tile, so
    there is no K-step accumulation trap)."""
    acc = jnp.dot(p_ref[...], w_ref[...], preferred_element_type=jnp.float32)
    acc = acc + b_ref[...]
    if apply_lrelu:
        acc = jnp.where(acc >= 0.0, acc, LRELU_SLOPE * acc)
    o_ref[...] = acc.astype(o_ref.dtype)


def _conv_in_lrelu_kernel(p_ref, w_ref, b_ref, o_ref, *, p_valid):
    """Fused conv-matmul + bias + InstanceNorm2d(affine=False) + LeakyReLU(0.2).

    p_ref: (P_pad, K) im2col patches of ONE sample (full spatial extent
    resident so per-(sample, channel) stats run on the f32 accumulator with no
    extra HBM round-trip).  Rows >= p_valid are zero padding and are masked out
    of the statistics (sublane reduce on the XLU)."""
    acc = jnp.dot(p_ref[...], w_ref[...], preferred_element_type=jnp.float32)
    acc = acc + b_ref[...]

    row = lax.broadcasted_iota(jnp.int32, acc.shape, 0)
    mask = row < p_valid
    inv_n = 1.0 / float(p_valid)
    mean = jnp.sum(jnp.where(mask, acc, 0.0), axis=0, keepdims=True) * inv_n
    cent = acc - mean
    var = jnp.sum(jnp.where(mask, cent * cent, 0.0), axis=0, keepdims=True) * inv_n
    y = cent * lax.rsqrt(var + IN_EPS)
    y = jnp.where(y >= 0.0, y, LRELU_SLOPE * y)
    o_ref[...] = y.astype(o_ref.dtype)


# ---------------------------------------------------------------------------
# Kernel wrappers (tiling / padding decisions)
# ---------------------------------------------------------------------------
def conv_bias_act(patches_2d, w_pad, b_pad, cout, apply_lrelu, out_dtype):
    """patches_2d: (M, K); w_pad: (K_pad, C_pad) bf16; b_pad: (1, C_pad) f32."""
    M, K = patches_2d.shape
    K_pad, C_pad = w_pad.shape
    if M > 512:
        M_pad, TM = _round_up(M, 512), 512       # biggest tile that stays a few MiB
    else:
        M_pad = _round_up(M, 8)
        TM = M_pad
    TC = 256 if C_pad % 256 == 0 else 128        # 256-wide tiles feed v6e/v7x MXU

    p = jnp.pad(patches_2d.astype(jnp.bfloat16), ((0, M_pad - M), (0, K_pad - K)))

    out = pl.pallas_call(
        functools.partial(_conv_bias_act_kernel, apply_lrelu=apply_lrelu),
        out_shape=jax.ShapeDtypeStruct((M_pad, C_pad), out_dtype),
        grid=(M_pad // TM, C_pad // TC),
        in_specs=[
            pl.BlockSpec((TM, K_pad), lambda i, j: (i, 0)),
            pl.BlockSpec((K_pad, TC), lambda i, j: (0, j)),
            pl.BlockSpec((1, TC), lambda i, j: (0, j)),
        ],
        out_specs=pl.BlockSpec((TM, TC), lambda i, j: (i, j)),
        compiler_params=pltpu.CompilerParams(
            dimension_semantics=("parallel", "parallel"),
            vmem_limit_bytes=VMEM_LIMIT_BYTES),
    )(p, w_pad, b_pad)
    return out[:M, :cout]


def conv_in_lrelu(patches_nhwk, w_pad, b_pad, cout):
    """Fused conv + InstanceNorm + LReLU.  patches_nhwk: (N, oh, ow, K)."""
    N, oh, ow, K = patches_nhwk.shape
    P = oh * ow
    P_pad = _round_up(P, 8)
    K_pad, C_pad = w_pad.shape
    TC = 256 if C_pad % 256 == 0 else 128

    p = patches_nhwk.reshape(N, P, K).astype(jnp.bfloat16)
    p = jnp.pad(p, ((0, 0), (0, P_pad - P), (0, K_pad - K)))

    out = pl.pallas_call(
        functools.partial(_conv_in_lrelu_kernel, p_valid=P),
        out_shape=jax.ShapeDtypeStruct((N, P_pad, C_pad), jnp.bfloat16),
        grid=(N, C_pad // TC),
        in_specs=[
            pl.BlockSpec((None, P_pad, K_pad), lambda n, c: (n, 0, 0)),
            pl.BlockSpec((K_pad, TC), lambda n, c: (0, c)),
            pl.BlockSpec((1, TC), lambda n, c: (0, c)),
        ],
        out_specs=pl.BlockSpec((None, P_pad, TC), lambda n, c: (n, 0, c)),
        compiler_params=pltpu.CompilerParams(
            dimension_semantics=("parallel", "parallel"),
            vmem_limit_bytes=VMEM_LIMIT_BYTES),
    )(p, w_pad, b_pad)
    return out[:, :P, :cout].reshape(N, oh, ow, cout)


# ---------------------------------------------------------------------------
# Plain-JAX glue: im2col, parameter init, discriminator forward, D_Plexer
# ---------------------------------------------------------------------------
def im2col(x_nhwc, k, stride, pad):
    """Extract (k,k) patches. Column order matches W[kh,kw,Cin,Cout].reshape."""
    x = jnp.pad(x_nhwc, ((0, 0), (pad, pad), (pad, pad), (0, 0)))
    n, hp, wp, _ = x.shape
    oh = (hp - k) // stride + 1
    ow = (wp - k) // stride + 1
    taps = []
    for i in range(k):
        for j in range(k):
            taps.append(x[:, i:i + stride * oh:stride, j:j + stride * ow:stride, :])
    p = jnp.concatenate(taps, axis=-1)              # (N, oh, ow, k*k*Cin)
    return p, oh, ow


def init_discriminator_params(key, input_nc, ndf):
    """Gaussian(0, 0.02) conv weights (like networks.py init), zero biases."""
    layer_dims = [(input_nc, ndf), (ndf, ndf * 2), (ndf * 2, ndf * 4), (ndf * 4, 1)]
    params = {}
    for i, (cin, cout) in enumerate(layer_dims):
        k = jax.random.fold_in(key, i)
        w = 0.02 * jax.random.normal(k, (4, 4, cin, cout), jnp.float32)
        w_flat = w.reshape(4 * 4 * cin, cout)
        b = jnp.zeros((cout,), jnp.float32)
        K = 4 * 4 * cin
        K_pad = _round_up(K, 128)
        C_pad = _round_up(cout, 128)
        params[f"w{i}"] = w_flat                     # f32, unpadded (reference)
        params[f"b{i}"] = b
        params[f"w{i}_p"] = jnp.pad(                 # bf16, lane-dense padded (kernel)
            w_flat, ((0, K_pad - K), (0, C_pad - cout))).astype(jnp.bfloat16)
        params[f"b{i}_p"] = jnp.pad(b, (0, C_pad - cout)).reshape(1, C_pad)
        params[f"cout{i}"] = cout                    # python int (static)
    return params


def discriminator_forward(params, x_nhwc):
    n = x_nhwc.shape[0]

    # layer 0: conv(4, s2, p1) + LeakyReLU (fused epilogue), bf16 activations out
    p, oh, ow = im2col(x_nhwc, 4, 2, 1)
    h = conv_bias_act(p.reshape(n * oh * ow, -1), params["w0_p"], params["b0_p"],
                      cout=params["cout0"], apply_lrelu=True, out_dtype=jnp.bfloat16)
    h = h.reshape(n, oh, ow, params["cout0"])

    # layer 1: conv(4, s2, p1) + InstanceNorm + LeakyReLU (single fused kernel)
    p, oh, ow = im2col(h, 4, 2, 1)
    h = conv_in_lrelu(p, params["w1_p"], params["b1_p"], params["cout1"])

    # layer 2: conv(4, s1, p1) + InstanceNorm + LeakyReLU (single fused kernel)
    p, oh, ow = im2col(h, 4, 1, 1)
    h = conv_in_lrelu(p, params["w2_p"], params["b2_p"], params["cout2"])

    # layer 3: conv(4, s1, p1) -> 1-channel patch logits (lane-dense in-kernel,
    # sliced to 1 channel in the wrapper)
    p, oh, ow = im2col(h, 4, 1, 1)
    y = conv_bias_act(p.reshape(n * oh * ow, -1), params["w3_p"], params["b3_p"],
                      cout=params["cout3"], apply_lrelu=False, out_dtype=jnp.float32)
    out_nhwc = y.reshape(n, oh, ow, 1)
    return jnp.transpose(out_nhwc, (0, 3, 1, 2))     # back to NCHW


class DPlexerPallas:
    """Mirror of D_Plexer: one parameter set ("network") per domain."""

    def __init__(self, n_domains, input_nc, ndf, n_layers, key):
        self.networks = [
            init_discriminator_params(jax.random.fold_in(key, d), input_nc, ndf)
            for d in range(n_domains)
        ]
        self.arg = (input_nc, ndf, n_layers)   # model_args[0][:3]

    def forward(self, x_nchw, domain):
        discriminator = self.networks[domain]
        input_nc = x_nchw.shape[1]             # mirrors D_Plexer.forward
        assert input_nc == self.arg[0]
        x_nhwc = jnp.transpose(x_nchw, (0, 2, 3, 1))
        return discriminator_forward(discriminator, x_nhwc)


# ---------------------------------------------------------------------------
# Pure-JAX f32 reference (for correctness check)
# ---------------------------------------------------------------------------
def _ref_conv(x_nhwc, w_flat, bias, cin, stride):
    w = w_flat.reshape(4, 4, cin, -1)
    y = lax.conv_general_dilated(
        x_nhwc, w, window_strides=(stride, stride), padding=((1, 1), (1, 1)),
        dimension_numbers=("NHWC", "HWIO", "NHWC"),
        precision=lax.Precision.HIGHEST,
    )
    return y + bias.reshape(1, 1, 1, -1)


def _ref_in_lrelu(x_nhwc):
    mean = jnp.mean(x_nhwc, axis=(1, 2), keepdims=True)
    var = jnp.mean((x_nhwc - mean) ** 2, axis=(1, 2), keepdims=True)
    y = (x_nhwc - mean) * lax.rsqrt(var + IN_EPS)
    return jnp.where(y >= 0.0, y, LRELU_SLOPE * y)


def reference_forward(params, x_nchw, input_nc, ndf):
    h = jnp.transpose(x_nchw, (0, 2, 3, 1))
    h = _ref_conv(h, params["w0"], params["b0"], input_nc, 2)
    h = jnp.where(h >= 0.0, h, LRELU_SLOPE * h)
    h = _ref_in_lrelu(_ref_conv(h, params["w1"], params["b1"], ndf, 2))
    h = _ref_in_lrelu(_ref_conv(h, params["w2"], params["b2"], ndf * 2, 1))
    h = _ref_conv(h, params["w3"], params["b3"], ndf * 4, 1)
    return jnp.transpose(h, (0, 3, 1, 2))


# ---------------------------------------------------------------------------
if __name__ == "__main__":
    key = jax.random.PRNGKey(0)
    n_domains, input_nc, ndf, n_layers = 3, 4, 8, 2
    batch, spatial = 2, 16

    plexer = DPlexerPallas(n_domains, input_nc, ndf, n_layers, key)

    x = jax.random.normal(jax.random.fold_in(key, 999),
                          (batch, input_nc, spatial, spatial), jnp.float32)
    domain = 1

    out = jax.block_until_ready(plexer.forward(x, domain))
    assert out.shape == (batch, 1, 2, 2), out.shape
    assert bool(jnp.all(jnp.isfinite(out)))

    ref = jax.block_until_ready(
        reference_forward(plexer.networks[domain], x, input_nc, ndf))
    max_err = float(jnp.max(jnp.abs(out.astype(jnp.float32) - ref)))
    # bf16 matmul inputs + bf16 activations + instance-norm over tiny spatial
    # extents (9/16 px) loosen the match vs the f32 reference; 5e-2 still
    # catches any structural/semantic bug (those show O(1) discrepancies).
    assert max_err < 5e-2, f"mismatch vs reference: {max_err}"

    print("KERNEL_OK")
</pallas_src>

<mosaic_0001>
module attributes {stable_mosaic.version = 11 : i64} {
  func.func @_conv_bias_act_kernel(%arg0: i32, %arg1: i32, %arg2: memref<128x128xbf16, #tpu.memory_space<vmem>>, %arg3: memref<128x128xbf16, #tpu.memory_space<vmem>>, %arg4: memref<1x128xf32, #tpu.memory_space<vmem>>, %arg5: memref<128x128xbf16, #tpu.memory_space<vmem>>) attributes {dimension_semantics = [#tpu.dimension_semantics<parallel>, #tpu.dimension_semantics<parallel>], iteration_bounds = array<i64: 1, 1>, scalar_prefetch = 0 : i64, scratch_operands = 0 : i64, tpu.core_type = #tpu.core_type<tc>, window_params = [{transform_indices = @transform_0, window_bounds = array<i64: 128, 128>}, {transform_indices = @transform_1, window_bounds = array<i64: 128, 128>}, {transform_indices = @transform_2, window_bounds = array<i64: 1, 128>}, {transform_indices = @transform_3, window_bounds = array<i64: 128, 128>}]} {
    %c0 = arith.constant 0 : index
    %c0_0 = arith.constant 0 : index
    %0 = vector.load %arg2[%c0, %c0_0] : memref<128x128xbf16, #tpu.memory_space<vmem>>, vector<128x128xbf16>
    %c0_1 = arith.constant 0 : index
    %c0_2 = arith.constant 0 : index
    %1 = vector.load %arg3[%c0_1, %c0_2] : memref<128x128xbf16, #tpu.memory_space<vmem>>, vector<128x128xbf16>
    %cst = arith.constant dense<0.000000e+00> : vector<128x128xf32>
    %2 = tpu.matmul %0, %1, %cst {dimension_numbers = #tpu.dot_dimension_numbers<[1], [0], [0], [1], [0, 0, 1, 1], [], []>} : vector<128x128xbf16>, vector<128x128xbf16>, vector<128x128xf32> -> vector<128x128xf32>
    %c0_3 = arith.constant 0 : index
    %c0_4 = arith.constant 0 : index
    %3 = vector.load %arg4[%c0_3, %c0_4] : memref<1x128xf32, #tpu.memory_space<vmem>>, vector<1x128xf32>
    %4 = vector.broadcast %3 : vector<1x128xf32> to vector<128x128xf32>
    %5 = arith.addf %2, %4 : vector<128x128xf32>
    %cst_5 = arith.constant 0.000000e+00 : f32
    %6 = vector.broadcast %cst_5 : f32 to vector<128x128xf32>
    %7 = arith.cmpf oge, %5, %6 : vector<128x128xf32>
    %cst_6 = arith.constant 2.000000e-01 : f32
    %8 = vector.broadcast %cst_6 : f32 to vector<128x128xf32>
    %9 = arith.mulf %8, %5 : vector<128x128xf32>
    %10 = arith.select %7, %5, %9 : vector<128x128xi1>, vector<128x128xf32>
    %11 = arith.truncf %10 : vector<128x128xf32> to vector<128x128xbf16>
    %c0_7 = arith.constant 0 : index
    %c0_8 = arith.constant 0 : index
    %12 = vector.load %arg5[%c0_7, %c0_8] : memref<128x128xbf16, #tpu.memory_space<vmem>>, vector<128x128xbf16>
    tpu.vector_store %arg5[%c0_7, %c0_8], %11 {strides = array<i32>} : memref<128x128xbf16, #tpu.memory_space<vmem>>, vector<128x128xbf16>,
    return
  }
  func.func @transform_0(%arg0: i32, %arg1: i32) -> (i32, i32) {
    %c0_i32 = arith.constant 0 : i32
    %c0_i32_0 = arith.constant 0 : i32
    return %arg0, %c0_i32 : i32, i32
  }
  func.func @transform_1(%arg0: i32, %arg1: i32) -> (i32, i32) {
    %c0_i32 = arith.constant 0 : i32
    %c0_i32_0 = arith.constant 0 : i32
    return %c0_i32, %arg1 : i32, i32
  }
  func.func @transform_2(%arg0: i32, %arg1: i32) -> (i32, i32) {
    %c0_i32 = arith.constant 0 : i32
    %c0_i32_0 = arith.constant 0 : i32
    return %c0_i32, %arg1 : i32, i32
  }
  func.func @transform_3(%arg0: i32, %arg1: i32) -> (i32, i32) {
    %c0_i32 = arith.constant 0 : i32
    return %arg0, %arg1 : i32, i32
  }
}

</mosaic_0001>

<llo_original>
// kernel: tpu_custom_call.1
$region0: #{tpu_custom_call.1}
  #allocation0 [shape = 'u32[]', space=smem, size = 0x4, offset = 0x4, fixed_abs, tag = 'smem constant byte address 0x4 - core index']
  #allocation1 [shape = 'u32[72,128]{1,0:T(1,128)}', space=vmem, size = 0x9000, scoped, tag = 'internal scratch']
  %s0 = inlined_call_operand.hbm [shape: bf16[128,128], index: 0, kind: input, shape index: {}]
  %s1 = inlined_call_operand.hbm [shape: bf16[128,128], index: 1, kind: input, shape index: {}]
  %s2 = inlined_call_operand.vmem [shape: f32[1,128], index: 2, kind: input, shape index: {}]
  %s3 = inlined_call_operand.hbm [shape: bf16[128,128], index: 3, kind: output, shape index: {}]
  %s4 = sld [smem:[#allocation0]]
  $region30: #{tpu_custom_call.1} parent=0
    _
  %s6 = ssub.s32 1, %s4
  %s7 = scalar_select 0, %s6, %s4
  $region1: #{tpu_custom_call.1} parent=0
    #allocation2 [shape = 'u8[32768]{0}', space=vmem, size = 0x8000, scoped, tag = 'input window, operand 0, single buffered']
    #allocation3 [shape = 's32[1]{0}', space=sflag, size = 0x4, scoped, tag = 'scoped memory for tpu_custom_call.1']
    #allocation4 [shape = 's32[1]{0}', space=sflag, size = 0x4, scoped, tag = 'scoped memory for tpu_custom_call.1']
    #allocation5 [shape = 'u8[32768]{0}', space=vmem, size = 0x8000, scoped, tag = 'input window, operand 1, single buffered']
    #allocation6 [shape = 's32[1]{0}', space=sflag, size = 0x4, scoped, tag = 'scoped memory for tpu_custom_call.1']
    #allocation7 [shape = 'u8[32768]{0}', space=vmem, size = 0x8000, scoped, tag = 'output window, operand 0, single buffered']
    %8 = vsyncpa [#allocation3], 0
    %9 = vsyncpa [#allocation6], 0
    %10 = vsyncpa [#allocation4], 0
    // Predicated region
    $region2: #{tpu_custom_call.1} parent=1 // pred_check
      _
    $region3: #{tpu_custom_call.1} parent=1 // pred_check_branch
      %12 = sbr.rel (0) target = $region5
    $region4: #{tpu_custom_call.1} parent=1 // pred_region
      %14 = vsyncadd [#allocation3], 0
      %s15 = sshll.u32 %s0, 4
      %s16 = int_to_ptr.hbm [resolvable:$true] %s15
      %s17 = sshll.u32 [#allocation2], 4
      %s18 = int_to_ptr.vmem [resolvable:$true] %s17
      %23 = dma.hbm_to_vmem [thread:$0]  %s16, 1024, %s18, [#allocation3], 64, 64, 4
    $region5: #{tpu_custom_call.1} parent=1 // pred_fallthru
      _
    // Predicated region
    $region6: #{tpu_custom_call.1} parent=1 // pred_check
      _
    $region7: #{tpu_custom_call.1} parent=1 // pred_check_branch
      %25 = sbr.rel (0) target = $region9
    $region8: #{tpu_custom_call.1} parent=1 // pred_region
      %27 = vsyncadd [#allocation6], 0
      %s28 = sshll.u32 %s1, 4
      %s29 = int_to_ptr.hbm [resolvable:$true] %s28
      %s30 = sshll.u32 [#allocation5], 4
      %s31 = int_to_ptr.vmem [resolvable:$true] %s30
      %36 = dma.hbm_to_vmem [thread:$0]  %s29, 1024, %s31, [#allocation6], 64, 64, 4
    $region9: #{tpu_custom_call.1} parent=1 // pred_fallthru
      _
    // Predicated region
    $region10: #{tpu_custom_call.1} parent=1 // pred_check
      _
    $region11: #{tpu_custom_call.1} parent=1 // pred_check_branch
      %38 = sbr.rel (0) target = $region13
    $region12: #{tpu_custom_call.1} parent=1 // pred_region
      _
    $region13: #{tpu_custom_call.1} parent=1 // pred_fallthru
      _
    // Predicated region
    $region14: #{tpu_custom_call.1} parent=1 // pred_check
      _
    $region15: #{tpu_custom_call.1} parent=1 // pred_check_branch
      %40 = sbr.rel (0) target = $region17
    $region16: #{tpu_custom_call.1} parent=1 // pred_region
      %42 = dma.done [#allocation3], 1024
    $region17: #{tpu_custom_call.1} parent=1 // pred_fallthru
      _
    // Predicated region
    $region18: #{tpu_custom_call.1} parent=1 // pred_check
      _
    $region19: #{tpu_custom_call.1} parent=1 // pred_check_branch
      %44 = sbr.rel (0) target = $region21
    $region20: #{tpu_custom_call.1} parent=1 // pred_region
      %46 = dma.done [#allocation6], 1024
    $region21: #{tpu_custom_call.1} parent=1 // pred_fallthru
      _
    %v47 = vld [vmem:[#allocation2] sm:$0xf]
    %v48 = vld [vmem:[#allocation2 + $0x4] sm:$0xf]
    %v49 = vld [vmem:[#allocation2 + $0x8] sm:$0xf]
    %v50 = vld [vmem:[#allocation2 + $0xc] sm:$0xf]
    %v51 = vld [vmem:[#allocation2 + $0x10] sm:$0xf]
    %v52 = vld [vmem:[#allocation2 + $0x14] sm:$0xf]
    %v53 = vld [vmem:[#allocation2 + $0x18] sm:$0xf]
    %v54 = vld [vmem:[#allocation2 + $0x1c] sm:$0xf]
    %v55 = vld [vmem:[#allocation2 + $0x20] sm:$0xf]
    %v56 = vld [vmem:[#allocation2 + $0x24] sm:$0xf]
    %v57 = vld [vmem:[#allocation2 + $0x28] sm:$0xf]
    %v58 = vld [vmem:[#allocation2 + $0x2c] sm:$0xf]
    %v59 = vld [vmem:[#allocation2 + $0x30] sm:$0xf]
    %v60 = vld [vmem:[#allocation2 + $0x34] sm:$0xf]
    %v61 = vld [vmem:[#allocation2 + $0x38] sm:$0xf]
    %v62 = vld [vmem:[#allocation2 + $0x3c] sm:$0xf]
    %v63 = vld [vmem:[#allocation5] sm:$0xf]
    %v64 = vld [vmem:[#allocation5 + $0x4] sm:$0xf]
    %v65 = vld [vmem:[#allocation5 + $0x8] sm:$0xf]
    %v66 = vld [vmem:[#allocation5 + $0xc] sm:$0xf]
    %v67 = vld [vmem:[#allocation5 + $0x10] sm:$0xf]
    %v68 = vld [vmem:[#allocation5 + $0x14] sm:$0xf]
    %v69 = vld [vmem:[#allocation5 + $0x18] sm:$0xf]
    %v70 = vld [vmem:[#allocation5 + $0x1c] sm:$0xf]
    %v71 = vld [vmem:[#allocation5 + $0x20] sm:$0xf]
    %v72 = vld [vmem:[#allocation5 + $0x24] sm:$0xf]
    %v73 = vld [vmem:[#allocation5 + $0x28] sm:$0xf]
    %v74 = vld [vmem:[#allocation5 + $0x2c] sm:$0xf]
    %v75 = vld [vmem:[#allocation5 + $0x30] sm:$0xf]
    %v76 = vld [vmem:[#allocation5 + $0x34] sm:$0xf]
    %v77 = vld [vmem:[#allocation5 + $0x38] sm:$0xf]
    %v78 = vld [vmem:[#allocation5 + $0x3c] sm:$0xf]
    %v79 = vld [vmem:[%s2] sm:$0x1]
    %v81 = vperm.slane %v79, 0
    %v99 = vunpack.c.l.b16 %v47
    %v100 = vunpack.c.l.b16 %v48
    %v101 = vunpack.c.l.b16 %v49
    %v102 = vunpack.c.l.b16 %v50
    %v103 = vunpack.c.l.b16 %v51
    %v104 = vunpack.c.l.b16 %v52
    %v105 = vunpack.c.l.b16 %v53
    %v106 = vunpack.c.l.b16 %v54
    %v107 = vunpack.c.l.b16 %v55
    %v108 = vunpack.c.l.b16 %v56
    %v109 = vunpack.c.l.b16 %v57
    %v110 = vunpack.c.l.b16 %v58
    %v111 = vunpack.c.l.b16 %v59
    %v112 = vunpack.c.l.b16 %v60
    %v113 = vunpack.c.l.b16 %v61
    %v114 = vunpack.c.l.b16 %v62
    %v115 = vpack.c.b16 %v100, %v99
    %v116 = vpack.c.b16 %v102, %v101
    %v117 = vpack.c.b16 %v104, %v103
    %v118 = vpack.c.b16 %v106, %v105
    %v119 = vpack.c.b16 %v108, %v107
    %v120 = vpack.c.b16 %v110, %v109
    %v121 = vpack.c.b16 %v112, %v111
    %v122 = vpack.c.b16 %v114, %v113
    %v147 = vunpack.c.l.b16 %v63
    %v148 = vunpack.c.l.b16 %v64
    %v149 = vunpack.c.l.b16 %v65
    %v150 = vunpack.c.l.b16 %v66
    %v151 = vunpack.c.l.b16 %v67
    %v152 = vunpack.c.l.b16 %v68
    %v153 = vunpack.c.l.b16 %v69
    %v154 = vunpack.c.l.b16 %v70
    %v155 = vunpack.c.l.b16 %v71
    %v156 = vunpack.c.l.b16 %v72
    %v157 = vunpack.c.l.b16 %v73
    %v158 = vunpack.c.l.b16 %v74
    %v159 = vunpack.c.l.b16 %v75
    %v160 = vunpack.c.l.b16 %v76
    %v161 = vunpack.c.l.b16 %v77
    %v162 = vunpack.c.l.b16 %v78
    %v163 = vpack.c.b16 %v148, %v147
    %v164 = vpack.c.b16 %v150, %v149
    %v165 = vpack.c.b16 %v152, %v151
    %v166 = vpack.c.b16 %v154, %v153
    %v167 = vpack.c.b16 %v156, %v155
    %v168 = vpack.c.b16 %v158, %v157
    %v169 = vpack.c.b16 %v160, %v159
    %v170 = vpack.c.b16 %v162, %v161
    %179 = vmatpush.bf16.msra.mxu0 %v170
    %180 = vmatpush.bf16.msra.mxu0 %v169
    %181 = vmatpush.bf16.msra.mxu0 %v168
    %182 = vmatpush.bf16.msra.mxu0 %v167
    %183 = vmatpush.bf16.msra.mxu0 %v166
    %184 = vmatpush.bf16.msra.mxu0 %v165
    %185 = vmatpush.bf16.msra.mxu0 %v164
    %186 = vmatpush.bf16.msra.mxu0 %v163
    %187 = vmatmul.bf16.gmra.mxu0 %v115
    %v188 = vpop.f32.mrf.mxu0
    %v189 = vadd.f32 %v81, %v188
    %v190 = vpop.f32.mrf.mxu0
    %v191 = vadd.f32 %v81, %v190
    %192 = vmatmul.bf16.gmra.mxu0 %v116
    %v193 = vpop.f32.mrf.mxu0
    %v194 = vadd.f32 %v81, %v193
    %v195 = vpop.f32.mrf.mxu0
    %v196 = vadd.f32 %v81, %v195
    %197 = vmatmul.bf16.gmra.mxu0 %v117
    %v198 = vpop.f32.mrf.mxu0
    %v199 = vadd.f32 %v81, %v198
    %v200 = vpop.f32.mrf.mxu0
    %v201 = vadd.f32 %v81, %v200
    %202 = vmatmul.bf16.gmra.mxu0 %v118
    %v203 = vpop.f32.mrf.mxu0
    %v204 = vadd.f32 %v81, %v203
    %v205 = vpop.f32.mrf.mxu0
    %v206 = vadd.f32 %v81, %v205
    %207 = vmatmul.bf16.gmra.mxu0 %v119
    %v208 = vpop.f32.mrf.mxu0
    %v209 = vadd.f32 %v81, %v208
    %v210 = vpop.f32.mrf.mxu0
    %v211 = vadd.f32 %v81, %v210
    %212 = vmatmul.bf16.gmra.mxu0 %v120
    %v213 = vpop.f32.mrf.mxu0
    %v214 = vadd.f32 %v81, %v213
    %v215 = vpop.f32.mrf.mxu0
    %v216 = vadd.f32 %v81, %v215
    %217 = vmatmul.bf16.gmra.mxu0 %v121
    %v218 = vpop.f32.mrf.mxu0
    %v219 = vadd.f32 %v81, %v218
    %v220 = vpop.f32.mrf.mxu0
    %v221 = vadd.f32 %v81, %v220
    %222 = vmatmul.bf16.gmra.mxu0 %v122
    %v223 = vpop.f32.mrf.mxu0
    %v224 = vadd.f32 %v81, %v223
    %v225 = vpop.f32.mrf.mxu0
    %v226 = vadd.f32 %v81, %v225
    %227 = vdwg.mxu0
    %vm228 = vcmp.ge.f32.partialorder %v189, 0.0
    %vm229 = vcmp.ge.f32.partialorder %v191, 0.0
    %vm230 = vcmp.ge.f32.partialorder %v194, 0.0
    %vm231 = vcmp.ge.f32.partialorder %v196, 0.0
    %vm232 = vcmp.ge.f32.partialorder %v199, 0.0
    %vm233 = vcmp.ge.f32.partialorder %v201, 0.0
    %vm234 = vcmp.ge.f32.partialorder %v204, 0.0
    %vm235 = vcmp.ge.f32.partialorder %v206, 0.0
    %vm236 = vcmp.ge.f32.partialorder %v209, 0.0
    %vm237 = vcmp.ge.f32.partialorder %v211, 0.0
    %vm238 = vcmp.ge.f32.partialorder %v214, 0.0
    %vm239 = vcmp.ge.f32.partialorder %v216, 0.0
    %vm240 = vcmp.ge.f32.partialorder %v219, 0.0
    %vm241 = vcmp.ge.f32.partialorder %v221, 0.0
    %vm242 = vcmp.ge.f32.partialorder %v224, 0.0
    %vm243 = vcmp.ge.f32.partialorder %v226, 0.0
    %v244 = vmul.f32 %v189, 0.2
    %v245 = vmul.f32 %v191, 0.2
    %v246 = vmul.f32 %v194, 0.2
    %v247 = vmul.f32 %v196, 0.2
    %v248 = vmul.f32 %v199, 0.2
    %v249 = vmul.f32 %v201, 0.2
    %v250 = vmul.f32 %v204, 0.2
    %v251 = vmul.f32 %v206, 0.2
    %v252 = vmul.f32 %v209, 0.2
    %v253 = vmul.f32 %v211, 0.2
    %v254 = vmul.f32 %v214, 0.2
    %v255 = vmul.f32 %v216, 0.2
    %v256 = vmul.f32 %v219, 0.2
    %v257 = vmul.f32 %v221, 0.2
    %v258 = vmul.f32 %v224, 0.2
    %v259 = vmul.f32 %v226, 0.2
    %v260 = vsel %vm228, %v189, %v244
    %v261 = vsel %vm229, %v191, %v245
    %v262 = vsel %vm230, %v194, %v246
    %v263 = vsel %vm231, %v196, %v247
    %v264 = vsel %vm232, %v199, %v248
    %v265 = vsel %vm233, %v201, %v249
    %v266 = vsel %vm234, %v204, %v250
    %v267 = vsel %vm235, %v206, %v251
    %v268 = vsel %vm236, %v209, %v252
    %v269 = vsel %vm237, %v211, %v253
    %v270 = vsel %vm238, %v214, %v254
    %v271 = vsel %vm239, %v216, %v255
    %v272 = vsel %vm240, %v219, %v256
    %v273 = vsel %vm241, %v221, %v257
    %v274 = vsel %vm242, %v224, %v258
    %v275 = vsel %vm243, %v226, %v259
    %v276 = vpack.c.bf16 %v260, %v260
    %v277 = vpack.c.bf16 %v261, %v261
    %v278 = vpack.c.bf16 %v262, %v262
    %v279 = vpack.c.bf16 %v263, %v263
    %v280 = vpack.c.bf16 %v264, %v264
    %v281 = vpack.c.bf16 %v265, %v265
    %v282 = vpack.c.bf16 %v266, %v266
    %v283 = vpack.c.bf16 %v267, %v267
    %v284 = vpack.c.bf16 %v268, %v268
    %v285 = vpack.c.bf16 %v269, %v269
    %v286 = vpack.c.bf16 %v270, %v270
    %v287 = vpack.c.bf16 %v271, %v271
    %v288 = vpack.c.bf16 %v272, %v272
    %v289 = vpack.c.bf16 %v273, %v273
    %v290 = vpack.c.bf16 %v274, %v274
    %v291 = vpack.c.bf16 %v275, %v275
    %292 = vst [vmem:[#allocation7] sm:$0xf] %v276
    %293 = vst [vmem:[#allocation7 + $0x4] sm:$0xf] %v277
    %294 = vst [vmem:[#allocation7 + $0x8] sm:$0xf] %v278
    %295 = vst [vmem:[#allocation7 + $0xc] sm:$0xf] %v279
    %296 = vst [vmem:[#allocation7 + $0x10] sm:$0xf] %v280
    %297 = vst [vmem:[#allocation7 + $0x14] sm:$0xf] %v281
    %298 = vst [vmem:[#allocation7 + $0x18] sm:$0xf] %v282
    %299 = vst [vmem:[#allocation7 + $0x1c] sm:$0xf] %v283
    %300 = vst [vmem:[#allocation7 + $0x20] sm:$0xf] %v284
    %301 = vst [vmem:[#allocation7 + $0x24] sm:$0xf] %v285
    %302 = vst [vmem:[#allocation7 + $0x28] sm:$0xf] %v286
    %303 = vst [vmem:[#allocation7 + $0x2c] sm:$0xf] %v287
    %304 = vst [vmem:[#allocation7 + $0x30] sm:$0xf] %v288
    %305 = vst [vmem:[#allocation7 + $0x34] sm:$0xf] %v289
    %306 = vst [vmem:[#allocation7 + $0x38] sm:$0xf] %v290
    %307 = vst [vmem:[#allocation7 + $0x3c] sm:$0xf] %v291
    // Predicated region
    $region22: #{tpu_custom_call.1} parent=1 // pred_check
      _
    $region23: #{tpu_custom_call.1} parent=1 // pred_check_branch
      %309 = sbr.rel (0) target = $region25
    $region24: #{tpu_custom_call.1} parent=1 // pred_region
      %311 = vsyncadd [#allocation4], 0
      %s312 = sshll.u32 [#allocation7], 4
      %s313 = int_to_ptr.vmem [resolvable:$true] %s312
      %s314 = sshll.u32 %s3, 4
      %s315 = int_to_ptr.hbm [resolvable:$true] %s314
      %320 = dma.vmem_to_hbm [thread:$0]  %s313, 1024, %s315, [#allocation4], 64, 64, 4
    $region25: #{tpu_custom_call.1} parent=1 // pred_fallthru
      _
    // Predicated region
    $region26: #{tpu_custom_call.1} parent=1 // pred_check
      _
    $region27: #{tpu_custom_call.1} parent=1 // pred_check_branch
      %322 = sbr.rel (0) target = $region29
    $region28: #{tpu_custom_call.1} parent=1 // pred_region
      %324 = dma.done [#allocation4], 1024
    $region29: #{tpu_custom_call.1} parent=1 // pred_fallthru
      _
    %325 = vsyncpa [#allocation3], 1
    %326 = vsyncpa [#allocation6], 1
    %327 = vsyncpa [#allocation4], 1

</llo_original>
